<compile_context>
chip_gen: v5e
topology: v5e:2x2
jax: 0.10.0
libtpu: 0.0.40
codegen_flags: <defaults>
</compile_context>

<pallas_src>
import functools

import jax
import jax.numpy as jnp
import numpy as np
from jax.experimental import pallas as pl
from jax.experimental.pallas import tpu as pltpu


# ----------------------------------------------------------------------------
# activation
# ----------------------------------------------------------------------------
def _act_fn(act):
    if act == "relu":
        return lambda y: jnp.maximum(y, 0.0)
    if act == "lrelu":
        return lambda y: jnp.where(y >= 0.0, y, 0.2 * y)
    if act == "tanh":
        return jnp.tanh
    if act == "none":
        return lambda y: y
    raise ValueError(f"Unsupported activation: {act}")


# ----------------------------------------------------------------------------
# kernel: K-tiled matmul with f32 accumulator, fused bias + activation epilogue
# ----------------------------------------------------------------------------
def _make_kernel(act):
    act_f = _act_fn(act)

    def kernel(x_ref, w_ref, b_ref, o_ref, acc_ref):
        k = pl.program_id(2)

        @pl.when(k == 0)
        def _():
            acc_ref[...] = jnp.zeros_like(acc_ref)

        # bf16 x bf16 -> f32 accumulate on the MXU
        acc_ref[...] += jnp.dot(
            x_ref[...], w_ref[...], preferred_element_type=jnp.float32
        )

        @pl.when(k == pl.num_programs(2) - 1)
        def _():
            y = acc_ref[...] + b_ref[...]          # (1, tn) broadcasts over (tm, tn)
            o_ref[...] = act_f(y).astype(o_ref.dtype)

    return kernel


def _rup(a, m):
    return (a + m - 1) // m * m


# ----------------------------------------------------------------------------
# jitted 2-D core: transpose/cast/pad -> pallas_call -> slice, all fused by XLA
# ----------------------------------------------------------------------------
@functools.partial(jax.jit, static_argnames=("act",))
def _linear_block_2d(x2, weight, bias, *, act):
    M, K = x2.shape
    N = weight.shape[0]

    # bf16 operand storage (MXU rounds f32->bf16 at default precision anyway);
    # accumulation and epilogue remain f32.
    # TODO(synk): for a layer called repeatedly, cache the transposed/padded
    # bf16 weight at parameter-prep time instead of re-deriving it per call.
    x2 = x2.astype(jnp.bfloat16)
    w_t = jnp.transpose(weight).astype(jnp.bfloat16)        # (K, N)
    b2 = bias.reshape(1, N).astype(jnp.float32)

    # Tile selection: bf16 sublane packing -> tm multiple of 16; lane-dense
    # tn/tk multiples of 128.  Sizes are modest so double-buffered tiles fit
    # v5e's 16 MiB scoped VMEM and v7x's 64 MiB physical VMEM.
    tm = min(256, _rup(M, 16))
    tn = min(256, _rup(N, 128))
    tk = min(512, _rup(K, 128))

    Mp, Np, Kp = _rup(M, tm), _rup(N, tn), _rup(K, tk)

    if (Mp, Kp) != (M, K):
        x2 = jnp.pad(x2, ((0, Mp - M), (0, Kp - K)))
    if (Kp, Np) != (K, N):
        w_t = jnp.pad(w_t, ((0, Kp - K), (0, Np - N)))
    if Np != N:
        b2 = jnp.pad(b2, ((0, 0), (0, Np - N)))

    grid = (Mp // tm, Np // tn, Kp // tk)

    # Double-buffered inputs + double-buffered output + accumulator scratch.
    vmem_est = (
        2 * (tm * tk * 2 + tk * tn * 2 + 1 * tn * 4)
        + 2 * tm * tn * 4
        + tm * tn * 4
    )
    vmem_limit = int(min(64 * 1024 * 1024, max(16 * 1024 * 1024, 4 * vmem_est)))

    out = pl.pallas_call(
        _make_kernel(act),
        out_shape=jax.ShapeDtypeStruct((Mp, Np), jnp.float32),
        grid_spec=pltpu.PrefetchScalarGridSpec(
            num_scalar_prefetch=0,
            grid=grid,
            in_specs=[
                pl.BlockSpec((tm, tk), lambda i, j, k: (i, k)),   # activations
                pl.BlockSpec((tk, tn), lambda i, j, k: (k, j)),   # weight tile
                pl.BlockSpec((1, tn), lambda i, j, k: (0, j)),    # bias tile
            ],
            out_specs=pl.BlockSpec((tm, tn), lambda i, j, k: (i, j)),
            scratch_shapes=[pltpu.VMEM((tm, tn), jnp.float32)],
        ),
        compiler_params=pltpu.CompilerParams(
            dimension_semantics=("parallel", "parallel", "arbitrary"),
            vmem_limit_bytes=vmem_limit,
        ),
    )(x2, w_t, b2)

    if (Mp, Np) != (M, N):
        out = out[:M, :N]
    return out


# ----------------------------------------------------------------------------
# public wrapper
# ----------------------------------------------------------------------------
def linear_block_pallas(x, weight, bias, *, act="relu", norm="none",
                        use_sn=False):
    """LinearBlock forward.

    x:      (..., in_dim) float32
    weight: (out_dim, in_dim) float32   (PyTorch nn.Linear layout)
    bias:   (out_dim,) float32
    """
    if norm != "none":
        # TODO(synk): 'bn' / 'in' norm branches of LinearBlock not implemented.
        raise NotImplementedError("only norm='none' is supported")
    if use_sn:
        # TODO(synk): spectral_norm weight reparameterization not implemented.
        raise NotImplementedError("use_sn=True is not supported")

    orig_lead = x.shape[:-1]
    K = x.shape[-1]
    N = weight.shape[0]
    M = int(np.prod(orig_lead)) if orig_lead else 1

    out = _linear_block_2d(x.reshape(M, K), weight, bias, act=act)
    return out.reshape(*orig_lead, N)


# ----------------------------------------------------------------------------
# pure-JAX reference
# ----------------------------------------------------------------------------
def linear_block_reference(x, weight, bias, *, act="relu"):
    y = jnp.einsum("...k,nk->...n", x, weight,
                   precision=jax.lax.Precision.HIGHEST) + bias
    return _act_fn(act)(y)


# ----------------------------------------------------------------------------
# main
# ----------------------------------------------------------------------------
if __name__ == "__main__":
    key = jax.random.PRNGKey(0)

    # --- test 1: small shapes implied by the module usage -------------------
    B, S, IN_DIM, OUT_DIM = 2, 8, 32, 128
    kx, kw, kb, key = jax.random.split(key, 4)
    x = jax.random.normal(kx, (B, S, IN_DIM), dtype=jnp.float32)
    bound = 1.0 / np.sqrt(IN_DIM)
    weight = jax.random.uniform(kw, (OUT_DIM, IN_DIM), jnp.float32, -bound, bound)
    bias = jax.random.uniform(kb, (OUT_DIM,), jnp.float32, -bound, bound)

    out = jax.block_until_ready(
        linear_block_pallas(x, weight, bias, act="relu", norm="none"))
    ref = jax.block_until_ready(
        linear_block_reference(x, weight, bias, act="relu"))
    # bf16 operands (default MXU precision) vs f32 HIGHEST reference
    np.testing.assert_allclose(np.asarray(out), np.asarray(ref),
                               atol=2e-2, rtol=2e-2)

    # --- test 2: exercise the K-tiled accumulator path (multiple k steps) ---
    M2, IN2, OUT2 = 64, 1152, 384
    kx, kw, kb, key = jax.random.split(key, 4)
    x2 = jax.random.normal(kx, (M2, IN2), dtype=jnp.float32)
    bound2 = 1.0 / np.sqrt(IN2)
    w2 = jax.random.uniform(kw, (OUT2, IN2), jnp.float32, -bound2, bound2)
    b2 = jax.random.uniform(kb, (OUT2,), jnp.float32, -bound2, bound2)

    out2 = jax.block_until_ready(
        linear_block_pallas(x2, w2, b2, act="lrelu", norm="none"))
    ref2 = jax.block_until_ready(
        linear_block_reference(x2, w2, b2, act="lrelu"))
    np.testing.assert_allclose(np.asarray(out2), np.asarray(ref2),
                               atol=2e-2, rtol=2e-2)

    print("KERNEL_OK")
</pallas_src>

<mosaic_0001>
module attributes {stable_mosaic.version = 11 : i64} {
  func.func @kernel(%arg0: i32, %arg1: i32, %arg2: i32, %arg3: memref<16x128xbf16, #tpu.memory_space<vmem>>, %arg4: memref<128x128xbf16, #tpu.memory_space<vmem>>, %arg5: memref<1x128xf32, #tpu.memory_space<vmem>>, %arg6: memref<16x128xf32, #tpu.memory_space<vmem>>, %arg7: memref<16x128xf32, #tpu.memory_space<vmem>>) attributes {dimension_semantics = [#tpu.dimension_semantics<parallel>, #tpu.dimension_semantics<parallel>, #tpu.dimension_semantics<arbitrary>], iteration_bounds = array<i64: 1, 1, 1>, scalar_prefetch = 0 : i64, scratch_operands = 1 : i64, tpu.core_type = #tpu.core_type<tc>, window_params = [{transform_indices = @transform_0, window_bounds = array<i64: 16, 128>}, {transform_indices = @transform_1, window_bounds = array<i64: 128, 128>}, {transform_indices = @transform_2, window_bounds = array<i64: 1, 128>}, {transform_indices = @transform_3, window_bounds = array<i64: 16, 128>}]} {
    %c0_i32 = arith.constant 0 : i32
    %0 = arith.cmpi eq, %arg2, %c0_i32 : i32
    %1 = arith.extui %0 : i1 to i32
    %c0_i32_0 = arith.constant 0 : i32
    %2 = arith.cmpi ne, %1, %c0_i32_0 : i32
    scf.if %2 {
      %cst_10 = arith.constant 0.000000e+00 : f32
      %12 = vector.broadcast %cst_10 : f32 to vector<16x128xf32>
      %c0_11 = arith.constant 0 : index
      %c0_12 = arith.constant 0 : index
      %13 = vector.load %arg7[%c0_11, %c0_12] : memref<16x128xf32, #tpu.memory_space<vmem>>, vector<16x128xf32>
      tpu.vector_store %arg7[%c0_11, %c0_12], %12 {strides = array<i32>} : memref<16x128xf32, #tpu.memory_space<vmem>>, vector<16x128xf32>,
    } else {
    }
    %c0 = arith.constant 0 : index
    %c0_1 = arith.constant 0 : index
    %3 = vector.load %arg7[%c0, %c0_1] : memref<16x128xf32, #tpu.memory_space<vmem>>, vector<16x128xf32>
    %c0_2 = arith.constant 0 : index
    %c0_3 = arith.constant 0 : index
    %4 = vector.load %arg3[%c0_2, %c0_3] : memref<16x128xbf16, #tpu.memory_space<vmem>>, vector<16x128xbf16>
    %c0_4 = arith.constant 0 : index
    %c0_5 = arith.constant 0 : index
    %5 = vector.load %arg4[%c0_4, %c0_5] : memref<128x128xbf16, #tpu.memory_space<vmem>>, vector<128x128xbf16>
    %cst = arith.constant dense<0.000000e+00> : vector<16x128xf32>
    %6 = tpu.matmul %4, %5, %cst {dimension_numbers = #tpu.dot_dimension_numbers<[1], [0], [0], [1], [0, 0, 1, 1], [], []>} : vector<16x128xbf16>, vector<128x128xbf16>, vector<16x128xf32> -> vector<16x128xf32>
    %7 = arith.addf %3, %6 : vector<16x128xf32>
    %c0_6 = arith.constant 0 : index
    %c0_7 = arith.constant 0 : index
    %8 = vector.load %arg7[%c0_6, %c0_7] : memref<16x128xf32, #tpu.memory_space<vmem>>, vector<16x128xf32>
    tpu.vector_store %arg7[%c0_6, %c0_7], %7 {strides = array<i32>} : memref<16x128xf32, #tpu.memory_space<vmem>>, vector<16x128xf32>,
    %c0_i32_8 = arith.constant 0 : i32
    %9 = arith.cmpi eq, %arg2, %c0_i32_8 : i32
    %10 = arith.extui %9 : i1 to i32
    %c0_i32_9 = arith.constant 0 : i32
    %11 = arith.cmpi ne, %10, %c0_i32_9 : i32
    scf.if %11 {
      %c0_10 = arith.constant 0 : index
      %c0_11 = arith.constant 0 : index
      %12 = vector.load %arg7[%c0_10, %c0_11] : memref<16x128xf32, #tpu.memory_space<vmem>>, vector<16x128xf32>
      %c0_12 = arith.constant 0 : index
      %c0_13 = arith.constant 0 : index
      %13 = vector.load %arg5[%c0_12, %c0_13] : memref<1x128xf32, #tpu.memory_space<vmem>>, vector<1x128xf32>
      %14 = vector.broadcast %13 : vector<1x128xf32> to vector<16x128xf32>
      %15 = arith.addf %12, %14 : vector<16x128xf32>
      %cst_14 = arith.constant 0.000000e+00 : f32
      %16 = vector.broadcast %cst_14 : f32 to vector<16x128xf32>
      %17 = arith.maximumf %15, %16 : vector<16x128xf32>
      %c0_15 = arith.constant 0 : index
      %c0_16 = arith.constant 0 : index
      %18 = vector.load %arg6[%c0_15, %c0_16] : memref<16x128xf32, #tpu.memory_space<vmem>>, vector<16x128xf32>
      tpu.vector_store %arg6[%c0_15, %c0_16], %17 {strides = array<i32>} : memref<16x128xf32, #tpu.memory_space<vmem>>, vector<16x128xf32>,
    } else {
    }
    return
  }
  func.func @transform_0(%arg0: i32, %arg1: i32, %arg2: i32) -> (i32, i32) {
    %c0_i32 = arith.constant 0 : i32
    return %arg0, %arg2 : i32, i32
  }
  func.func @transform_1(%arg0: i32, %arg1: i32, %arg2: i32) -> (i32, i32) {
    %c0_i32 = arith.constant 0 : i32
    return %arg2, %arg1 : i32, i32
  }
  func.func @transform_2(%arg0: i32, %arg1: i32, %arg2: i32) -> (i32, i32) {
    %c0_i32 = arith.constant 0 : i32
    %c0_i32_0 = arith.constant 0 : i32
    return %c0_i32, %arg1 : i32, i32
  }
  func.func @transform_3(%arg0: i32, %arg1: i32, %arg2: i32) -> (i32, i32) {
    %c0_i32 = arith.constant 0 : i32
    return %arg0, %arg1 : i32, i32
  }
}

</mosaic_0001>

<llo_original>
// kernel: _linear_block_2d.1
$region0: #{_linear_block_2d.1}
  #allocation0 [shape = 'u32[]', space=smem, size = 0x4, offset = 0x4, fixed_abs, tag = 'smem constant byte address 0x4 - core index']
  #allocation1 [shape = 'u32[72,128]{1,0:T(1,128)}', space=vmem, size = 0x9000, scoped, tag = 'internal scratch']
  #allocation2 [shape = 'f32[16,128]{1,0:T(8,128)}', space=vmem, size = 0x2000, scoped, tag = 'scratch operand']
  %s0 = inlined_call_operand.vmem [shape: bf16[16,128], index: 0, kind: input, shape index: {}]
  %s1 = inlined_call_operand.vmem [shape: bf16[128,128], index: 1, kind: input, shape index: {}]
  %s2 = inlined_call_operand.vmem [shape: f32[1,128], index: 2, kind: input, shape index: {}]
  %s3 = inlined_call_operand.hbm [shape: f32[16,128], index: 3, kind: output, shape index: {}]
  %s4 = sld [smem:[#allocation0]]
  $region30: #{_linear_block_2d.1} parent=0
    _
  %s6 = ssub.s32 1, %s4
  %s7 = scalar_select 0, %s6, %s4
  $region1: #{_linear_block_2d.1} parent=0
    #allocation3 [shape = 'u8[8192]{0}', space=vmem, size = 0x2000, scoped, tag = 'output window, operand 0, single buffered']
    #allocation4 [shape = 's32[1]{0}', space=sflag, size = 0x4, scoped, tag = 'scoped memory for _linear_block_2d.1']
    %8 = vsyncpa [#allocation4], 0
    // Predicated region
    $region2: #{_linear_block_2d.1} parent=1 // pred_check
      _
    $region3: #{_linear_block_2d.1} parent=1 // pred_check_branch
      %10 = sbr.rel (0) target = $region5
    $region4: #{_linear_block_2d.1} parent=1 // pred_region
      _
    $region5: #{_linear_block_2d.1} parent=1 // pred_fallthru
      _
    // Predicated region
    $region6: #{_linear_block_2d.1} parent=1 // pred_check
      _
    $region7: #{_linear_block_2d.1} parent=1 // pred_check_branch
      %12 = sbr.rel (0) target = $region9
    $region8: #{_linear_block_2d.1} parent=1 // pred_region
      _
    $region9: #{_linear_block_2d.1} parent=1 // pred_fallthru
      _
    // Predicated region
    $region10: #{_linear_block_2d.1} parent=1 // pred_check
      _
    $region11: #{_linear_block_2d.1} parent=1 // pred_check_branch
      %14 = sbr.rel (0) target = $region13
    $region12: #{_linear_block_2d.1} parent=1 // pred_region
      _
    $region13: #{_linear_block_2d.1} parent=1 // pred_fallthru
      _
    %p15 = scmp.eq.s32.totalorder 0, 0
    // Predicated region
    $region14: #{_linear_block_2d.1} parent=1 // pred_check
      %p16 = pneg %p15
    $region15: #{_linear_block_2d.1} parent=1 // pred_check_branch
      %18 = sbr.rel (%p16) target = $region17
    $region16: #{_linear_block_2d.1} parent=1 // pred_region
      %19 = vst [vmem:[#allocation2] sm:$0xff] 0.0
      %20 = vst [vmem:[#allocation2 + $0x8] sm:$0xff] 0.0
    $region17: #{_linear_block_2d.1} parent=1 // pred_fallthru
      _
    %v21 = vld [vmem:[#allocation2] sm:$0xff]
    %v22 = vld [vmem:[#allocation2 + $0x8] sm:$0xff]
    %v23 = vld [vmem:[%s0] sm:$0xf]
    %v24 = vld [vmem:[%s0 + $0x4] sm:$0xf]
    %v25 = vld [vmem:[%s1] sm:$0xf]
    %v26 = vld [vmem:[%s1 + $0x4] sm:$0xf]
    %v27 = vld [vmem:[%s1 + $0x8] sm:$0xf]
    %v28 = vld [vmem:[%s1 + $0xc] sm:$0xf]
    %v29 = vld [vmem:[%s1 + $0x10] sm:$0xf]
    %v30 = vld [vmem:[%s1 + $0x14] sm:$0xf]
    %v31 = vld [vmem:[%s1 + $0x18] sm:$0xf]
    %v32 = vld [vmem:[%s1 + $0x1c] sm:$0xf]
    %v33 = vld [vmem:[%s1 + $0x20] sm:$0xf]
    %v34 = vld [vmem:[%s1 + $0x24] sm:$0xf]
    %v35 = vld [vmem:[%s1 + $0x28] sm:$0xf]
    %v36 = vld [vmem:[%s1 + $0x2c] sm:$0xf]
    %v37 = vld [vmem:[%s1 + $0x30] sm:$0xf]
    %v38 = vld [vmem:[%s1 + $0x34] sm:$0xf]
    %v39 = vld [vmem:[%s1 + $0x38] sm:$0xf]
    %v40 = vld [vmem:[%s1 + $0x3c] sm:$0xf]
    %v43 = vunpack.c.l.b16 %v23
    %v44 = vunpack.c.l.b16 %v24
    %v45 = vpack.c.b16 %v44, %v43
    %v63 = vunpack.c.l.b16 %v25
    %v64 = vunpack.c.l.b16 %v26
    %v65 = vunpack.c.l.b16 %v27
    %v66 = vunpack.c.l.b16 %v28
    %v67 = vunpack.c.l.b16 %v29
    %v68 = vunpack.c.l.b16 %v30
    %v69 = vunpack.c.l.b16 %v31
    %v70 = vunpack.c.l.b16 %v32
    %v71 = vunpack.c.l.b16 %v33
    %v72 = vunpack.c.l.b16 %v34
    %v73 = vunpack.c.l.b16 %v35
    %v74 = vunpack.c.l.b16 %v36
    %v75 = vunpack.c.l.b16 %v37
    %v76 = vunpack.c.l.b16 %v38
    %v77 = vunpack.c.l.b16 %v39
    %v78 = vunpack.c.l.b16 %v40
    %v79 = vpack.c.b16 %v64, %v63
    %v80 = vpack.c.b16 %v66, %v65
    %v81 = vpack.c.b16 %v68, %v67
    %v82 = vpack.c.b16 %v70, %v69
    %v83 = vpack.c.b16 %v72, %v71
    %v84 = vpack.c.b16 %v74, %v73
    %v85 = vpack.c.b16 %v76, %v75
    %v86 = vpack.c.b16 %v78, %v77
    %95 = vmatpush.bf16.msra.mxu0 %v86
    %96 = vmatpush.bf16.msra.mxu0 %v85
    %97 = vmatpush.bf16.msra.mxu0 %v84
    %98 = vmatpush.bf16.msra.mxu0 %v83
    %99 = vmatpush.bf16.msra.mxu0 %v82
    %100 = vmatpush.bf16.msra.mxu0 %v81
    %101 = vmatpush.bf16.msra.mxu0 %v80
    %102 = vmatpush.bf16.msra.mxu0 %v79
    %103 = vmatmul.bf16.gmra.mxu0 %v45
    %v104 = vpop.f32.mrf.mxu0
    %v105 = vadd.f32 0.0, %v104
    %v106 = vpop.f32.mrf.mxu0
    %v107 = vadd.f32 0.0, %v106
    %108 = vdwg.mxu0
    %v109 = vadd.f32 %v21, %v105
    %v110 = vadd.f32 %v22, %v107
    %111 = vst [vmem:[#allocation2] sm:$0xff] %v109
    %112 = vst [vmem:[#allocation2 + $0x8] sm:$0xff] %v110
    // Predicated region
    $region18: #{_linear_block_2d.1} parent=1 // pred_check
      %p113 = pneg %p15
    $region19: #{_linear_block_2d.1} parent=1 // pred_check_branch
      %115 = sbr.rel (%p113) target = $region21
    $region20: #{_linear_block_2d.1} parent=1 // pred_region
      %v116 = vld [vmem:[#allocation2] sm:$0xff]
      %v117 = vld [vmem:[#allocation2 + $0x8] sm:$0xff]
      %v118 = vld [vmem:[%s2] sm:$0x1]
      %v120 = vperm.slane %v118, 0
      %v122 = vadd.f32 %v116, %v120
      %v123 = vadd.f32 %v117, %v120
      %v124 = vmax.f32 %v122, 0.0
      %v125 = vmax.f32 %v123, 0.0
      %126 = vst [vmem:[#allocation3] sm:$0xff] %v124
      %127 = vst [vmem:[#allocation3 + $0x8] sm:$0xff] %v125
    $region21: #{_linear_block_2d.1} parent=1 // pred_fallthru
      _
    // Predicated region
    $region22: #{_linear_block_2d.1} parent=1 // pred_check
      _
    $region23: #{_linear_block_2d.1} parent=1 // pred_check_branch
      %129 = sbr.rel (0) target = $region25
    $region24: #{_linear_block_2d.1} parent=1 // pred_region
      %131 = vsyncadd [#allocation4], 0
      %s132 = sshll.u32 [#allocation3], 4
      %s133 = int_to_ptr.vmem [resolvable:$true] %s132
      %s134 = sshll.u32 %s3, 4
      %s135 = int_to_ptr.hbm [resolvable:$true] %s134
      %140 = dma.vmem_to_hbm [thread:$0]  %s133, 256, %s135, [#allocation4], 128, 128, 8
    $region25: #{_linear_block_2d.1} parent=1 // pred_fallthru
      _
    // Predicated region
    $region26: #{_linear_block_2d.1} parent=1 // pred_check
      _
    $region27: #{_linear_block_2d.1} parent=1 // pred_check_branch
      %142 = sbr.rel (0) target = $region29
    $region28: #{_linear_block_2d.1} parent=1 // pred_region
      %144 = dma.done [#allocation4], 256
    $region29: #{_linear_block_2d.1} parent=1 // pred_fallthru
      _
    %145 = vsyncpa [#allocation4], 1

</llo_original>
